<compile_context>
chip_gen: v7x
topology: tpu7x:2x2x1
jax: 0.10.0
libtpu: 0.0.40
codegen_flags: <defaults>
</compile_context>

<pallas_src>
import functools
import math

import jax
import jax.numpy as jnp
from jax.experimental import pallas as pl
from jax.experimental.pallas import tpu as pltpu


def _round_up(x: int, m: int) -> int:
    return ((x + m - 1) // m) * m


def _patch_embed_kernel(p_ref, w_ref, pos_ref, o_ref):
    # p_ref:   (TM, K)   bf16  im2col patch rows (flattened over B*N)
    # w_ref:   (K, Dp)   bf16  projection weight (resident across grid steps)
    # pos_ref: (TM, Dp)  f32   per-row positional embedding with conv bias folded in
    # o_ref:   (TM, Dp)        output rows (lane-dense, Dp multiple of 128)
    acc = jnp.dot(p_ref[...], w_ref[...], preferred_element_type=jnp.float32)
    o_ref[...] = (acc + pos_ref[...]).astype(o_ref.dtype)


def patch_embedding_forward(x, conv_w, conv_b, cls_token, positions, *, patch_size):
    """Equivalent of PatchEmbedding.forward for NCHW input x. Returns (B, N+1, D)."""
    B, C, H, W = x.shape
    ph, pw = patch_size
    assert H % ph == 0, "Image height must be divisible by patch height"
    assert W % pw == 0, "Image width must be divisible by patch width"
    gh, gw = H // ph, W // pw
    N = gh * gw
    D = conv_w.shape[0]
    K = C * ph * pw
    M = B * N

    interpolate = (ph == pw)
    num_positions = positions.shape[1] - 1
    if interpolate and not (N == num_positions and H == W):
        # TODO(synk): bilinear interpolation of positional encodings
        # (interpolate_pos_encoding) is host-side glue and not exercised by the
        # demo shapes (N == num_positions, H == W).
        raise NotImplementedError("positional-encoding interpolation path not implemented")

    # ---- host-side glue (fused under jax.jit with the pallas_call) -----------
    # im2col: (B,C,H,W) -> (B*N, K), inner ordering (C, ph, pw) matching OIHW weight.
    patches = x.reshape(B, C, gh, ph, gw, pw).transpose(0, 2, 4, 1, 3, 5).reshape(M, K)

    # Lane-dense embed dim: pad D up to a multiple of 128.
    Dp = 128 * pl.cdiv(D, 128)

    # M tiling: one big tile at small M, 256-row tiles for production shapes.
    TM = 256 if M >= 256 else _round_up(M, 8)
    Mp = _round_up(M, TM)

    # bf16 MXU operands (f32 accumulation inside the kernel).
    patches_b = patches.astype(jnp.bfloat16)
    if Mp != M:
        patches_b = jnp.pad(patches_b, ((0, Mp - M), (0, 0)))

    w_mat = conv_w.reshape(D, K).T                       # (K, D)
    w_mat = jnp.pad(w_mat, ((0, 0), (0, Dp - D))).astype(jnp.bfloat16)   # (K, Dp)

    # Fold conv bias into the per-patch positional rows; broadcast over batch.
    pos_fused = positions[0, 1:, :] + conv_b[None, :]    # (N, D)  f32
    pos_fused = jnp.pad(pos_fused, ((0, 0), (0, Dp - D)))            # (N, Dp)
    pos_flat = jnp.broadcast_to(pos_fused[None], (B, N, Dp)).reshape(M, Dp)
    if Mp != M:
        pos_flat = jnp.pad(pos_flat, ((0, Mp - M), (0, 0)))

    grid = (Mp // TM,)
    out = pl.pallas_call(
        _patch_embed_kernel,
        out_shape=jax.ShapeDtypeStruct((Mp, Dp), x.dtype),
        grid_spec=pltpu.PrefetchScalarGridSpec(
            num_scalar_prefetch=0,
            grid=grid,
            in_specs=[
                pl.BlockSpec((TM, K), lambda m: (m, 0)),    # patch rows, M-tiled
                pl.BlockSpec((K, Dp), lambda m: (0, 0)),    # weight: resident
                pl.BlockSpec((TM, Dp), lambda m: (m, 0)),   # fused pos rows
            ],
            out_specs=pl.BlockSpec((TM, Dp), lambda m: (m, 0)),
        ),
        compiler_params=pltpu.CompilerParams(dimension_semantics=("parallel",)),
    )(patches_b, w_mat, pos_flat)

    # ---- epilogue glue: slice padding away, prepend cls row ------------------
    patch_tokens = out[:M, :D].reshape(B, N, D)
    cls_row = (cls_token.reshape(1, 1, D) + positions[:, :1, :]).astype(x.dtype)
    cls_row = jnp.broadcast_to(cls_row, (B, 1, D))
    return jnp.concatenate([cls_row, patch_tokens], axis=1)


# ------------------------------ references -----------------------------------

def _reference_f32(x, conv_w, conv_b, cls_token, positions, patch_size):
    """Pure-JAX f32 reference mirroring the PyTorch forward."""
    ph, pw = patch_size
    y = jax.lax.conv_general_dilated(
        x, conv_w, window_strides=(ph, pw), padding="VALID",
        dimension_numbers=("NCHW", "OIHW", "NCHW"),
        precision=jax.lax.Precision.HIGHEST)
    y = y + conv_b.reshape(1, -1, 1, 1)
    B, D, gh, gw = y.shape
    patches = y.reshape(B, D, gh * gw).transpose(0, 2, 1)       # (B, N, D)
    cls = jnp.broadcast_to(cls_token.reshape(1, 1, D), (B, 1, D))
    emb = jnp.concatenate([cls, patches], axis=1)
    return emb + positions


def _reference_bf16(x, conv_w, conv_b, cls_token, positions, patch_size):
    """Matched-precision reference (bf16 operands, f32 accumulation)."""
    B, C, H, W = x.shape
    ph, pw = patch_size
    gh, gw = H // ph, W // pw
    N = gh * gw
    D = conv_w.shape[0]
    K = C * ph * pw
    patches = x.reshape(B, C, gh, ph, gw, pw).transpose(0, 2, 4, 1, 3, 5).reshape(B, N, K)
    p16 = patches.astype(jnp.bfloat16).astype(jnp.float32)
    w16 = conv_w.reshape(D, K).T.astype(jnp.bfloat16).astype(jnp.float32)
    proj = jnp.einsum("bnk,kd->bnd", p16, w16, precision=jax.lax.Precision.HIGHEST)
    proj = proj + conv_b[None, None, :]
    cls = jnp.broadcast_to(cls_token.reshape(1, 1, D), (B, 1, D))
    emb = jnp.concatenate([cls, proj], axis=1)
    return emb + positions


if __name__ == "__main__":
    # Module config: input_shape=(C, H, W)=(4, 16, 16), embed_dim=32, patch_size=(4, 4)
    B, C, H, W = 2, 4, 16, 16
    D = 32
    patch_size = (4, 4)
    gh, gw = H // patch_size[0], W // patch_size[1]
    N = gh * gw  # 16 patches -> 17 tokens with cls

    key = jax.random.PRNGKey(0)
    k_x, k_w, k_b, k_cls, k_pos = jax.random.split(key, 5)

    x = jax.random.normal(k_x, (B, C, H, W), jnp.float32)
    conv_w = jax.random.normal(k_w, (D, C, patch_size[0], patch_size[1]), jnp.float32)
    conv_w = conv_w * (1.0 / math.sqrt(C * patch_size[0] * patch_size[1]))
    conv_b = jax.random.normal(k_b, (D,), jnp.float32) * 0.01
    cls_token = jax.random.normal(k_cls, (1, 1, D), jnp.float32)
    positions = jax.random.normal(k_pos, (1, N + 1, D), jnp.float32)

    fwd = jax.jit(patch_embedding_forward, static_argnames=("patch_size",))
    out = fwd(x, conv_w, conv_b, cls_token, positions, patch_size=patch_size)
    out = jax.block_until_ready(out)

    assert out.shape == (B, N + 1, D), out.shape

    ref16 = _reference_bf16(x, conv_w, conv_b, cls_token, positions, patch_size)
    ref32 = _reference_f32(x, conv_w, conv_b, cls_token, positions, patch_size)

    # Tight check against a matched-precision (bf16 operand, f32 accum) reference.
    assert jnp.allclose(out, ref16, atol=1e-3, rtol=1e-3), "mismatch vs bf16-operand reference"
    # Looser check against the full-f32 PyTorch-equivalent reference
    # (difference is only bf16 quantization of the projection operands).
    assert jnp.allclose(out, ref32, atol=5e-2, rtol=5e-2), "mismatch vs f32 reference"

    print("KERNEL_OK")
</pallas_src>

<mosaic_0001>
module attributes {stable_mosaic.version = 11 : i64} {
  func.func @_patch_embed_kernel(%arg0: i32, %arg1: memref<32x64xbf16, #tpu.memory_space<vmem>>, %arg2: memref<64x128xbf16, #tpu.memory_space<vmem>>, %arg3: memref<32x128xf32, #tpu.memory_space<vmem>>, %arg4: memref<32x128xf32, #tpu.memory_space<vmem>>) attributes {dimension_semantics = [#tpu.dimension_semantics<parallel>], iteration_bounds = array<i64: 1>, scalar_prefetch = 0 : i64, scratch_operands = 0 : i64, tpu.core_type = #tpu.core_type<tc>, window_params = [{transform_indices = @transform_0, window_bounds = array<i64: 32, 64>}, {pipeline_mode = #tpu.pipeline_mode<synchronous>, transform_indices = @transform_1, window_bounds = array<i64: 64, 128>}, {transform_indices = @transform_2, window_bounds = array<i64: 32, 128>}, {transform_indices = @transform_3, window_bounds = array<i64: 32, 128>}]} {
    %c0 = arith.constant 0 : index
    %c0_0 = arith.constant 0 : index
    %0 = vector.load %arg1[%c0, %c0_0] : memref<32x64xbf16, #tpu.memory_space<vmem>>, vector<32x64xbf16>
    %c0_1 = arith.constant 0 : index
    %c0_2 = arith.constant 0 : index
    %1 = vector.load %arg2[%c0_1, %c0_2] : memref<64x128xbf16, #tpu.memory_space<vmem>>, vector<64x128xbf16>
    %cst = arith.constant dense<0.000000e+00> : vector<32x128xf32>
    %2 = tpu.matmul %0, %1, %cst {dimension_numbers = #tpu.dot_dimension_numbers<[1], [0], [0], [1], [0, 0, 1, 1], [], []>} : vector<32x64xbf16>, vector<64x128xbf16>, vector<32x128xf32> -> vector<32x128xf32>
    %c0_3 = arith.constant 0 : index
    %c0_4 = arith.constant 0 : index
    %3 = vector.load %arg3[%c0_3, %c0_4] : memref<32x128xf32, #tpu.memory_space<vmem>>, vector<32x128xf32>
    %4 = arith.addf %2, %3 : vector<32x128xf32>
    %c0_5 = arith.constant 0 : index
    %c0_6 = arith.constant 0 : index
    %5 = vector.load %arg4[%c0_5, %c0_6] : memref<32x128xf32, #tpu.memory_space<vmem>>, vector<32x128xf32>
    tpu.vector_store %arg4[%c0_5, %c0_6], %4 {strides = array<i32>} : memref<32x128xf32, #tpu.memory_space<vmem>>, vector<32x128xf32>,
    return
  }
  func.func @transform_0(%arg0: i32) -> (i32, i32) {
    %c0_i32 = arith.constant 0 : i32
    %c0_i32_0 = arith.constant 0 : i32
    return %arg0, %c0_i32 : i32, i32
  }
  func.func @transform_1(%arg0: i32) -> (i32, i32) {
    %c0_i32 = arith.constant 0 : i32
    %c0_i32_0 = arith.constant 0 : i32
    %c0_i32_1 = arith.constant 0 : i32
    return %c0_i32, %c0_i32_0 : i32, i32
  }
  func.func @transform_2(%arg0: i32) -> (i32, i32) {
    %c0_i32 = arith.constant 0 : i32
    %c0_i32_0 = arith.constant 0 : i32
    return %arg0, %c0_i32 : i32, i32
  }
  func.func @transform_3(%arg0: i32) -> (i32, i32) {
    %c0_i32 = arith.constant 0 : i32
    %c0_i32_0 = arith.constant 0 : i32
    return %arg0, %c0_i32 : i32, i32
  }
}

</mosaic_0001>

<llo_original>
// kernel: patch_embedding_forward.1
$region0: #{patch_embedding_forward.1}
  #allocation0 [shape = 'u32[]', space=smem, size = 0x4, offset = 0x4, fixed_abs, tag = 'smem constant byte address 0x4 - core index']
  #allocation1 [shape = 'u32[144,128]{1,0:T(1,128)}', space=vmem, size = 0x12000, scoped, tag = 'internal scratch']
  %s0 = inlined_call_operand.vmem [shape: bf16[32,64], index: 0, kind: input, shape index: {}]
  %s1 = inlined_call_operand.vmem [shape: bf16[64,128], index: 1, kind: input, shape index: {}]
  %s2 = inlined_call_operand.vmem [shape: f32[32,128], index: 2, kind: input, shape index: {}]
  %s3 = inlined_call_operand.vmem [shape: f32[32,128], index: 3, kind: output, shape index: {}]
  %s4 = sld [smem:[#allocation0]]
  $region22: #{patch_embedding_forward.1} parent=0
    _
  %s6 = ssub.s32 1, %s4
  %s7 = scalar_select 0, %s6, %s4
  // Predicated region
  $region2: #{patch_embedding_forward.1} parent=0 // pred_check
    _
  $region3: #{patch_embedding_forward.1} parent=0 // pred_check_branch
    %9 = sbr.rel (0) target = $region5
  $region4: #{patch_embedding_forward.1} parent=0 // pred_region
    _
  $region5: #{patch_embedding_forward.1} parent=0 // pred_fallthru
    _
  // Predicated region
  $region6: #{patch_embedding_forward.1} parent=0 // pred_check
    _
  $region7: #{patch_embedding_forward.1} parent=0 // pred_check_branch
    %11 = sbr.rel (0) target = $region9
  $region8: #{patch_embedding_forward.1} parent=0 // pred_region
    _
  $region9: #{patch_embedding_forward.1} parent=0 // pred_fallthru
    _
  // Predicated region
  $region10: #{patch_embedding_forward.1} parent=0 // pred_check
    _
  $region11: #{patch_embedding_forward.1} parent=0 // pred_check_branch
    %13 = sbr.rel (0) target = $region13
  $region12: #{patch_embedding_forward.1} parent=0 // pred_region
    _
  $region13: #{patch_embedding_forward.1} parent=0 // pred_fallthru
    _
  %v15 = vld [vmem:[%s0] sm:$0xf]
  %v16 = vld [vmem:[%s0 + $0x4] sm:$0xf]
  %v17 = vld [vmem:[%s0 + $0x8] sm:$0xf]
  %v18 = vld [vmem:[%s0 + $0xc] sm:$0xf]
  %v19 = vld [vmem:[%s1] sm:$0xf]
  %v20 = vld [vmem:[%s1 + $0x4] sm:$0xf]
  %v21 = vld [vmem:[%s1 + $0x8] sm:$0xf]
  %v22 = vld [vmem:[%s1 + $0xc] sm:$0xf]
  %v23 = vld [vmem:[%s1 + $0x10] sm:$0xf]
  %v24 = vld [vmem:[%s1 + $0x14] sm:$0xf]
  %v25 = vld [vmem:[%s1 + $0x18] sm:$0xf]
  %v26 = vld [vmem:[%s1 + $0x1c] sm:$0xf]
  %v27 = vld [vmem:[%s2] sm:$0xff]
  %v28 = vld [vmem:[%s2 + $0x8] sm:$0xff]
  %v29 = vld [vmem:[%s2 + $0x10] sm:$0xff]
  %v30 = vld [vmem:[%s2 + $0x18] sm:$0xff]
  %v35 = vunpack.c.l.b16 %v15
  %v36 = vunpack.c.l.b16 %v16
  %v37 = vunpack.c.l.b16 %v17
  %v38 = vunpack.c.l.b16 %v18
  %v39 = vpack.c.b16 %v36, %v35
  %v40 = vpack.c.b16 %v38, %v37
  %v49 = vunpack.c.l.b16 %v19
  %v50 = vunpack.c.l.b16 %v20
  %v51 = vunpack.c.l.b16 %v21
  %v52 = vunpack.c.l.b16 %v22
  %v53 = vunpack.c.l.b16 %v23
  %v54 = vunpack.c.l.b16 %v24
  %v55 = vunpack.c.l.b16 %v25
  %v56 = vunpack.c.l.b16 %v26
  %v57 = vpack.c.b16 %v50, %v49
  %v58 = vpack.c.b16 %v52, %v51
  %v59 = vpack.c.b16 %v54, %v53
  %v60 = vpack.c.b16 %v56, %v55
  %vm65 = vcmask 523264
  %v67 = vsel %vm65, %v39, 0
  %v70 = vsel %vm65, %v40, 0
  %72 = vmatprep.subr.bf16.mxu0 0
  %73 = vmatpush1.bf16.msra.mxu0 %v57
  %74 = vmatprep.subr.bf16.mxu0 0
  %75 = vmatpush1.bf16.msra.mxu0 %v58
  %76 = vmatprep.subr.bf16.mxu0 0
  %77 = vmatpush1.bf16.msra.mxu0 %v59
  %78 = vmatprep.subr.bf16.mxu0 0
  %79 = vmatpush1.bf16.msra.mxu0 %v60
  %80 = vmatprep.subr.bf16.mxu0 0
  %81 = vmatpush1.bf16.msra.mxu0 0
  %82 = vmatprep.subr.bf16.mxu0 0
  %83 = vmatpush1.bf16.msra.mxu0 0
  %84 = vmatprep.subr.bf16.mxu0 0
  %85 = vmatpush1.bf16.msra.mxu0 0
  %86 = vmatprep.subr.bf16.mxu0 0
  %87 = vmatpush1.bf16.msra.mxu0 0
  %88 = vmatprep.subr.bf16.mxu0 0
  %89 = vmatpush1.bf16.msra.mxu0 0
  %90 = vmatprep.subr.bf16.mxu0 0
  %91 = vmatpush1.bf16.msra.mxu0 0
  %92 = vmatprep.subr.bf16.mxu0 0
  %93 = vmatpush1.bf16.msra.mxu0 0
  %94 = vmatprep.subr.bf16.mxu0 0
  %95 = vmatpush1.bf16.msra.mxu0 0
  %96 = vmatprep.subr.bf16.mxu0 0
  %97 = vmatpush1.bf16.msra.mxu0 0
  %98 = vmatprep.subr.bf16.mxu0 0
  %99 = vmatpush1.bf16.msra.mxu0 0
  %100 = vmatprep.subr.bf16.mxu0 0
  %101 = vmatpush1.bf16.msra.mxu0 0
  %102 = vmatprep.subr.bf16.mxu0 0
  %103 = vmatpush1.bf16.msra.mxu0 0
  %104 = vmatprep.mubr.bf16.mxu0 0
  %105 = vmatmul.mubr.bf16.gmra.mrb[0].mxu0 %v67
  %v106 = vpop.f32.mrb[0].mxu0
  %v107 = vadd.f32 %v27, %v106
  %v108 = vpop.f32.mrb[0].mxu0
  %v109 = vpop.f32.mrb[0].mxu0
  %v110 = vadd.f32 %v28, %v109
  %v111 = vpop.f32.mrb[0].mxu0
  %112 = vmatprep.mubr.bf16.mxu0 0
  %113 = vmatmul.mubr.bf16.gmra.mrb[0].mxu0 %v70
  %v114 = vpop.f32.mrb[0].mxu0
  %v115 = vadd.f32 %v29, %v114
  %v116 = vpop.f32.mrb[0].mxu0
  %v117 = vpop.f32.mrb[0].mxu0
  %v118 = vadd.f32 %v30, %v117
  %v119 = vpop.f32.mrb[0].mxu0
  %120 = vdwg.mxu0
  %121 = vst [vmem:[%s3] sm:$0xff] %v107
  %122 = vst [vmem:[%s3 + $0x8] sm:$0xff] %v110
  %123 = vst [vmem:[%s3 + $0x10] sm:$0xff] %v115
  %124 = vst [vmem:[%s3 + $0x18] sm:$0xff] %v118
  // Predicated region
  $region14: #{patch_embedding_forward.1} parent=0 // pred_check
    _
  $region15: #{patch_embedding_forward.1} parent=0 // pred_check_branch
    %126 = sbr.rel (0) target = $region17
  $region16: #{patch_embedding_forward.1} parent=0 // pred_region
    _
  $region17: #{patch_embedding_forward.1} parent=0 // pred_fallthru
    _
  // Predicated region
  $region18: #{patch_embedding_forward.1} parent=0 // pred_check
    _
  $region19: #{patch_embedding_forward.1} parent=0 // pred_check_branch
    %128 = sbr.rel (0) target = $region21
  $region20: #{patch_embedding_forward.1} parent=0 // pred_region
    _
  $region21: #{patch_embedding_forward.1} parent=0 // pred_fallthru
    _

</llo_original>
